<compile_context>
chip_gen: v6e
topology: v6e:2x2x1
jax: 0.10.0
libtpu: 0.0.40
codegen_flags: <defaults>
</compile_context>

<pallas_src>
import jax
import jax.numpy as jnp
from jax.experimental import pallas as pl
from jax.experimental.pallas import tpu as pltpu


# 8 * 32768 * 4B = 1 MiB per block; in+out double-buffered ~= 4 MiB, which is
# comfortably below the scoped-VMEM default on v5e/v6e and v7x's 64 MiB VMEM.
_MAX_LANE_BLOCK = 32768


def _roi_rescale_kernel(scale_ref, rois_ref, out_ref):
    # scale_ref: SMEM (1,) f32 ; rois_ref / out_ref: VMEM (8, block) f32.
    s = scale_ref[0]
    a = (1.0 + s) * 0.5
    c = (1.0 - s) * 0.5

    r = rois_ref[...]                                  # (8, block)

    # Pair mate is 4 sublanes away (x1<->x2, y1<->y2); shift=4 on an 8-row
    # axis is self-inverse, so a single XLU roll covers both directions and
    # no pre-zeroing is needed (batch/pad rows never roll onto box rows).
    mate = pltpu.roll(r, 4, 0)

    # Box rows are {1, 2, 5, 6}; build the mask from an (8, 1) sublane iota
    # and let the select broadcast it across lanes.
    row = jax.lax.broadcasted_iota(jnp.int32, (8, 1), 0)
    is_box = jnp.logical_or(jnp.logical_or(row == 1, row == 2),
                            jnp.logical_or(row == 5, row == 6))

    # Single full-tile, unmasked store (no per-row masked sublane stores).
    out_ref[...] = jnp.where(is_box, a * r + c * mate, r)


def _bucket(n):
    """Round the RoI count up to the next power of two, minimum 128 lanes.

    Bucketing keeps the set of distinct pallas_call shapes (and hence Mosaic
    compiles) small even though the RoI count varies per image.
    """
    return max(128, 1 << max(int(n) - 1, 0).bit_length())


def _roi_rescale_padded(rois_cm_pad, scale):
    """Kernel call on (8, n_pad) coordinate-major padded rois."""
    n_pad = rois_cm_pad.shape[1]
    block = min(n_pad, _MAX_LANE_BLOCK)     # both powers of two -> block | n_pad
    return pl.pallas_call(
        _roi_rescale_kernel,
        out_shape=jax.ShapeDtypeStruct((8, n_pad), jnp.float32),
        grid=(n_pad // block,),
        in_specs=[
            pl.BlockSpec(memory_space=pltpu.SMEM),         # scale (runtime scalar)
            pl.BlockSpec((8, block), lambda i: (0, i)),    # rois, lane-tiled
        ],
        out_specs=pl.BlockSpec((8, block), lambda i: (0, i)),
        input_output_aliases={1: 0},                       # in-place when donatable
        compiler_params=pltpu.CompilerParams(
            dimension_semantics=("parallel",)),
    )(scale, rois_cm_pad)


@jax.jit
def _roi_rescale_cm_jit(rois_cm, scale_factor):
    """Coordinate-major roi_rescale, fully fused under one jit.

    Args:
      rois_cm: (5, N) float32, rows = (batch_idx, x1, y1, x2, y2).
      scale_factor: scalar.
    Returns:
      (5, N) float32 rescaled rois.
    """
    ncoord, n = rois_cm.shape
    assert ncoord == 5
    n_pad = _bucket(n)

    r = jnp.pad(rois_cm.astype(jnp.float32), ((0, 0), (0, n_pad - n)))
    z = jnp.zeros((1, n_pad), jnp.float32)
    # Sublane layout: 0=batch, 1=x1, 2=y1, 3/4=pad, 5=x2, 6=y2, 7=pad.
    padded = jnp.concatenate([r[0:3], z, z, r[3:5], z], axis=0)

    scale = jnp.asarray(scale_factor, dtype=jnp.float32).reshape(1)
    out = _roi_rescale_padded(padded, scale)

    # Undo the sublane reordering and lane padding.
    return jnp.concatenate([out[0:3, :n], out[5:7, :n]], axis=0)


@jax.jit
def _roi_rescale_rm_jit(rois, scale_factor):
    """Row-major (N, 5) path; transposes are fused under the same jit."""
    return _roi_rescale_cm_jit(rois.T, scale_factor).T


def roi_rescale_pallas_cm(rois_cm, scale_factor):
    """Coordinate-major (5, N) roi_rescale (no transposes on this path)."""
    return _roi_rescale_cm_jit(rois_cm, scale_factor)


def roi_rescale_pallas(rois, scale_factor):
    """Row-major (N, 5) API matching BaseRoIExtractor.roi_rescale."""
    return _roi_rescale_rm_jit(rois, scale_factor)


class BaseRoIExtractorJax:
    """JAX/Pallas counterpart of the PyTorch BaseRoIExtractor (concrete parts)."""

    def __init__(self, out_channels, featmap_strides):
        self.out_channels = out_channels
        self.featmap_strides = featmap_strides
        self.fp16_enabled = False
        # spatial scales the RoI layers would have been built with:
        self.spatial_scales = [1.0 / s for s in featmap_strides]

    @property
    def num_inputs(self):
        return len(self.featmap_strides)

    def init_weights(self):
        pass

    def roi_rescale(self, rois, scale_factor):
        return roi_rescale_pallas(rois, scale_factor)


def _roi_rescale_ref(rois, scale_factor):
    cx = (rois[:, 1] + rois[:, 3]) * 0.5
    cy = (rois[:, 2] + rois[:, 4]) * 0.5
    w = rois[:, 3] - rois[:, 1]
    h = rois[:, 4] - rois[:, 2]
    new_w = w * scale_factor
    new_h = h * scale_factor
    x1 = cx - new_w * 0.5
    x2 = cx + new_w * 0.5
    y1 = cy - new_h * 0.5
    y2 = cy + new_h * 0.5
    return jnp.stack((rois[:, 0], x1, y1, x2, y2), axis=-1)


def _make_rois(key, n):
    k1, k2, k3 = jax.random.split(key, 3)
    # batch indices in {0,1}; box coords in image space (16x16 feature maps
    # with stride 4 -> image ~64), matching a small (2, 4, 16, 16) setup.
    batch_idx = jax.random.randint(k1, (n, 1), 0, 2).astype(jnp.float32)
    xy1 = jax.random.uniform(k2, (n, 2), minval=0.0, maxval=30.0)
    wh = jax.random.uniform(k3, (n, 2), minval=2.0, maxval=30.0)
    return jnp.concatenate([batch_idx, xy1, xy1 + wh], axis=-1).astype(jnp.float32)


if __name__ == "__main__":
    key = jax.random.PRNGKey(0)
    k_small, k_large = jax.random.split(key)

    extractor = BaseRoIExtractorJax(out_channels=4, featmap_strides=[4, 8, 16, 32])
    assert extractor.num_inputs == 4
    scale_factor = 1.5

    # Small case: 8 rois (consistent with a (2, 4, 16, 16) feature setup).
    rois = _make_rois(k_small, 8)
    out = jax.block_until_ready(extractor.roi_rescale(rois, scale_factor))
    ref = _roi_rescale_ref(rois, scale_factor)
    assert out.shape == (8, 5)
    assert jnp.allclose(out, ref, atol=1e-4, rtol=1e-5), (out, ref)

    # Coordinate-major path (no transposes) gives the same result.
    out_cm = jax.block_until_ready(roi_rescale_pallas_cm(rois.T, scale_factor))
    assert jnp.allclose(out_cm.T, ref, atol=1e-4, rtol=1e-5)

    # A second RoI count in a different bucket: exercises lane padding + slice
    # and the power-of-two bucketing (128 vs 256).
    rois_l = _make_rois(k_large, 131)
    out_l = jax.block_until_ready(extractor.roi_rescale(rois_l, scale_factor))
    ref_l = _roi_rescale_ref(rois_l, scale_factor)
    assert out_l.shape == (131, 5)
    assert jnp.allclose(out_l, ref_l, atol=1e-4, rtol=1e-5)

    print("KERNEL_OK")
</pallas_src>

<mosaic_0001>
module attributes {stable_mosaic.version = 11 : i64} {
  func.func @_roi_rescale_kernel(%arg0: i32, %arg1: memref<1xf32, #tpu.memory_space<smem>>, %arg2: memref<8x128xf32, #tpu.memory_space<vmem>>, %arg3: memref<8x128xf32, #tpu.memory_space<vmem>>) attributes {dimension_semantics = [#tpu.dimension_semantics<parallel>], iteration_bounds = array<i64: 1>, scalar_prefetch = 0 : i64, scratch_operands = 0 : i64, tpu.core_type = #tpu.core_type<tc>, window_params = [{transform_indices = @transform_0, window_bounds = array<i64: 1>}, {transform_indices = @transform_1, window_bounds = array<i64: 8, 128>}, {transform_indices = @transform_2, window_bounds = array<i64: 8, 128>}]} {
    %c0 = arith.constant 0 : index
    %0 = memref.load %arg1[%c0] : memref<1xf32, #tpu.memory_space<smem>>
    %cst = arith.constant 1.000000e+00 : f32
    %1 = arith.addf %cst, %0 : f32
    %cst_0 = arith.constant 5.000000e-01 : f32
    %2 = arith.mulf %1, %cst_0 : f32
    %cst_1 = arith.constant 1.000000e+00 : f32
    %3 = arith.subf %cst_1, %0 : f32
    %cst_2 = arith.constant 5.000000e-01 : f32
    %4 = arith.mulf %3, %cst_2 : f32
    %c0_3 = arith.constant 0 : index
    %c0_4 = arith.constant 0 : index
    %5 = vector.load %arg2[%c0_3, %c0_4] : memref<8x128xf32, #tpu.memory_space<vmem>>, vector<8x128xf32>
    %c4_i32 = arith.constant 4 : i32
    %6 = tpu.dynamic_rotate %5 by %c4_i32 dim 0 : vector<8x128xf32>, i32 -> vector<8x128xf32>
    %7 = tpu.iota {dimensions = array<i32: 0>} : vector<8x1xi32>
    %c1_i32 = arith.constant 1 : i32
    %8 = vector.broadcast %c1_i32 : i32 to vector<8x1xi32>
    %9 = arith.cmpi eq, %7, %8 : vector<8x1xi32>
    %c2_i32 = arith.constant 2 : i32
    %10 = vector.broadcast %c2_i32 : i32 to vector<8x1xi32>
    %11 = arith.cmpi eq, %7, %10 : vector<8x1xi32>
    %12 = arith.ori %9, %11 : vector<8x1xi1>
    %c5_i32 = arith.constant 5 : i32
    %13 = vector.broadcast %c5_i32 : i32 to vector<8x1xi32>
    %14 = arith.cmpi eq, %7, %13 : vector<8x1xi32>
    %c6_i32 = arith.constant 6 : i32
    %15 = vector.broadcast %c6_i32 : i32 to vector<8x1xi32>
    %16 = arith.cmpi eq, %7, %15 : vector<8x1xi32>
    %17 = arith.ori %14, %16 : vector<8x1xi1>
    %18 = arith.ori %12, %17 : vector<8x1xi1>
    %19 = vector.broadcast %2 : f32 to vector<8x128xf32>
    %20 = arith.mulf %19, %5 : vector<8x128xf32>
    %21 = vector.broadcast %4 : f32 to vector<8x128xf32>
    %22 = arith.mulf %21, %6 : vector<8x128xf32>
    %23 = arith.addf %20, %22 : vector<8x128xf32>
    %24 = vector.shape_cast %18 : vector<8x1xi1> to vector<8x1xi1>
    %25 = vector.broadcast %24 : vector<8x1xi1> to vector<8x128xi1>
    %26 = arith.select %25, %23, %5 : vector<8x128xi1>, vector<8x128xf32>
    %c0_5 = arith.constant 0 : index
    %c0_6 = arith.constant 0 : index
    %27 = vector.load %arg3[%c0_5, %c0_6] : memref<8x128xf32, #tpu.memory_space<vmem>>, vector<8x128xf32>
    tpu.vector_store %arg3[%c0_5, %c0_6], %26 {strides = array<i32>} : memref<8x128xf32, #tpu.memory_space<vmem>>, vector<8x128xf32>,
    return
  }
  func.func @transform_0(%arg0: i32) -> i32 {
    %c0_i32 = arith.constant 0 : i32
    %c0_i32_0 = arith.constant 0 : i32
    return %c0_i32 : i32
  }
  func.func @transform_1(%arg0: i32) -> (i32, i32) {
    %c0_i32 = arith.constant 0 : i32
    %c0_i32_0 = arith.constant 0 : i32
    return %c0_i32, %arg0 : i32, i32
  }
  func.func @transform_2(%arg0: i32) -> (i32, i32) {
    %c0_i32 = arith.constant 0 : i32
    %c0_i32_0 = arith.constant 0 : i32
    return %c0_i32, %arg0 : i32, i32
  }
}

</mosaic_0001>

<llo_original>
// kernel: _roi_rescale_cm_jit.1
$region0: #{_roi_rescale_cm_jit.1}
  #allocation0 [shape = 'u32[]', space=smem, size = 0x4, offset = 0x4, fixed_abs, tag = 'smem constant byte address 0x4 - core index']
  #allocation1 [shape = 'u32[144,128]{1,0:T(1,128)}', space=vmem, size = 0x12000, scoped, tag = 'internal scratch']
  #allocation2 [shape = 'f32[1]{0:T(128)S(6)}', space=smem, size = 0x200, scoped, tag = 'scoped memory for _roi_rescale_cm_jit.1']
  %s0 = inlined_call_operand.<no memory space> [shape: f32[1], index: 0, kind: input, shape index: {}]
  %s1 = inlined_call_operand.vmem [shape: f32[8,128], index: 1, kind: input, shape index: {}, may-alias: {1,2}]
  %s2 = inlined_call_operand.vmem [shape: f32[8,128], index: 2, kind: output, shape index: {}, may-alias: {1,2}]
  %s3 = sld [smem:[#allocation0]]
  $region18: #{_roi_rescale_cm_jit.1} parent=0
    _
  %s5 = ssub.s32 1, %s3
  %s6 = scalar_select 0, %s5, %s3
  %7 = sst [smem:[#allocation2]] %s0
  // Predicated region
  $region2: #{_roi_rescale_cm_jit.1} parent=0 // pred_check
    _
  $region3: #{_roi_rescale_cm_jit.1} parent=0 // pred_check_branch
    %9 = sbr.rel (0) target = $region5
  $region4: #{_roi_rescale_cm_jit.1} parent=0 // pred_region
    _
  $region5: #{_roi_rescale_cm_jit.1} parent=0 // pred_fallthru
    _
  // Predicated region
  $region6: #{_roi_rescale_cm_jit.1} parent=0 // pred_check
    _
  $region7: #{_roi_rescale_cm_jit.1} parent=0 // pred_check_branch
    %11 = sbr.rel (0) target = $region9
  $region8: #{_roi_rescale_cm_jit.1} parent=0 // pred_region
    _
  $region9: #{_roi_rescale_cm_jit.1} parent=0 // pred_fallthru
    _
  %s12 = sld [smem:[#allocation2]]
  %s13 = sadd.f32 %s12, 1.0
  %s14 = smul.f32 %s13, 0.5
  %s15 = ssub.f32 1.0, %s12
  %s16 = smul.f32 %s15, 0.5
  %v17 = vld [vmem:[%s1] sm:$0xff]
  %v18 = vrot.slane %v17, 4
  %v19 = vlaneseq
  %v20 = vshrl.u32 %v19, 7
  %vm21 = vcmp.eq.s32.totalorder %v20, 1
  %vm22 = vcmp.eq.s32.totalorder %v20, 2
  %vm23 = vmor %vm21, %vm22
  %vm24 = vcmp.eq.s32.totalorder %v20, 5
  %vm25 = vcmp.eq.s32.totalorder %v20, 6
  %vm26 = vmor %vm24, %vm25
  %vm27 = vmor %vm23, %vm26
  %v28 = vstv %s14
  %v29 = vmul.f32 %v28, %v17
  %v30 = vstv %s16
  %v31 = vmul.f32 %v30, %v18
  %v32 = vadd.f32 %v29, %v31
  %v33 = vsel %vm27, 1, 0
  %vm34 = vcmp.eq.s32.totalorder %v33, 1
  %v35 = vsel %vm34, %v32, %v17
  %36 = vst [vmem:[%s2] sm:$0xff] %v35
  // Predicated region
  $region10: #{_roi_rescale_cm_jit.1} parent=0 // pred_check
    _
  $region11: #{_roi_rescale_cm_jit.1} parent=0 // pred_check_branch
    %38 = sbr.rel (0) target = $region13
  $region12: #{_roi_rescale_cm_jit.1} parent=0 // pred_region
    _
  $region13: #{_roi_rescale_cm_jit.1} parent=0 // pred_fallthru
    _
  // Predicated region
  $region14: #{_roi_rescale_cm_jit.1} parent=0 // pred_check
    _
  $region15: #{_roi_rescale_cm_jit.1} parent=0 // pred_check_branch
    %40 = sbr.rel (0) target = $region17
  $region16: #{_roi_rescale_cm_jit.1} parent=0 // pred_region
    _
  $region17: #{_roi_rescale_cm_jit.1} parent=0 // pred_fallthru
    _

</llo_original>
